<compile_context>
chip_gen: v5e
topology: v5e:2x2
jax: 0.10.0
libtpu: 0.0.40
codegen_flags: <defaults>
</compile_context>

<pallas_src>
import functools

import jax
import jax.numpy as jnp
from jax import lax
from jax.experimental import pallas as pl
from jax.experimental.pallas import tpu as pltpu

D_THRE = 0.1          # self.d_thre
NUM_ITERATIONS = 10   # self.num_iterations
NORM_EVERY = 2        # renormalize the power iteration every 2 matvecs
# (self.ratio / self.nms_radius only affect the dead seed-selection branch)


def _sc2_pcr_kernel(p2d_ref, p2dt_ref, p3d_ref, p3dt_ref, conf_ref, *,
                    n_valid: int):
    n = p2d_ref.shape[0]          # padded size, multiple of 128

    # Load each operand once; slice the *values* in the static unrolls below.
    p2d = p2d_ref[...]      # [N, 2] f32
    p2dt = p2dt_ref[...]    # [2, N] f32
    p3d = p3d_ref[...]      # [N, 3] f32
    p3dt = p3dt_ref[...]    # [3, N] f32

    # ---- fused SC construction --------------------------------------------
    # Squared pairwise distances via [N,1]-[1,N] VPU broadcasts; at most a
    # couple of NxN f32 temporaries are live at any point.
    acc2 = jnp.zeros((n, n), jnp.float32)
    for c in range(2):                              # static unroll over coords
        d = p2d[:, c:c + 1] - p2dt[c:c + 1, :]
        acc2 = acc2 + d * d
    acc3 = jnp.zeros((n, n), jnp.float32)
    for c in range(3):
        d = p3d[:, c:c + 1] - p3dt[c:c + 1, :]
        acc3 = acc3 + d * d

    # |sqrt(a) - sqrt(b)|^2 == a + b - 2*sqrt(a*b): one EUP sqrt per element
    # instead of two.  Cancellation error here is ~1e-5, far below bf16 eps.
    cross_sq = acc2 + acc3 - 2.0 * jnp.sqrt(acc2 * acc3)
    sc = jnp.maximum(1.0 - cross_sq * (1.0 / (D_THRE * D_THRE)), 0.0)

    if n_valid < n:
        # Zero the rows/columns introduced by host-side padding so they do
        # not perturb the leading eigenvector of the real block.
        row = lax.broadcasted_iota(jnp.int32, (n, n), 0)
        col = lax.broadcasted_iota(jnp.int32, (n, n), 1)
        sc = jnp.where((row < n_valid) & (col < n_valid), sc, 0.0)

    # Single bf16 materialization for the native MXU path (f32 accumulate).
    # TODO(synk): add an f32 / precision=HIGHEST variant if exact numerical
    # parity with the f32 torch reference is required.
    sc_bf = sc.astype(jnp.bfloat16)

    # ---- power iteration (cal_leading_eigenvector, method='power') ---------
    # SC is symmetric, so the lane-dense row form v @ SC == (SC @ v_col)^T.
    # v is kept as 8 identical rows -> full sublane occupancy.  Intermediate
    # normalization is a pure positive rescale (direction unchanged), so it is
    # only applied every NORM_EVERY matvecs; the final normalization is exact.
    # TODO(synk): for very small N, stage SC once in MXU weight registers via
    # pltpu.matmul_push_rhs/acc_lhs/pop to avoid re-streaming the RHS 10x.
    v = jnp.ones((8, n), jnp.float32)
    for it in range(NUM_ITERATIONS):
        v = jnp.dot(v.astype(jnp.bfloat16), sc_bf,
                    preferred_element_type=jnp.float32)              # MXU
        if (it % NORM_EVERY == NORM_EVERY - 1) and it != NUM_ITERATIONS - 1:
            ssq = jnp.sum(v * v, axis=-1, keepdims=True)             # XLU
            v = v * lax.rsqrt(ssq + 1e-12)                           # EUP
    # Exact final normalization, matching torch's `x / (norm(x) + 1e-6)`.
    # TODO(synk): torch.allclose early-break skipped; fixed 10 iterations.
    nrm = jnp.sqrt(jnp.sum(v * v, axis=-1, keepdims=True))
    v = v / (nrm + 1e-6)

    conf_ref[...] = v[0:1, :]        # lane-dense [1, N_pad] store


def _physical_vmem_bytes() -> int:
    """Per-TensorCore physical VMEM for the current generation."""
    try:
        return int(pltpu.get_tpu_info().vmem_capacity_bytes)
    except Exception:
        pass
    try:
        kind = jax.devices()[0].device_kind.lower()
    except Exception:
        kind = ""
    # v7x has 64 MiB per TC; v5e / v6e have 128 MiB.
    return 64 * 1024 * 1024 if "7" in kind else 128 * 1024 * 1024


def _vmem_limit_bytes(n_pad: int) -> int:
    phys = _physical_vmem_bytes()
    # Never request the whole physical VMEM: leave ~1/8 (>= 8 MiB) headroom
    # for IO double-buffers and Mosaic internal scratch.
    # v7x: 64 -> 56 MiB;  v5e/v6e: 128 -> 112 MiB.
    ceiling = phys - max(8 * 1024 * 1024, phys // 8)
    # Live set: <= ~3 NxN f32 transients + 1 NxN bf16 SC + small vectors + IO.
    needed = 16 * n_pad * n_pad + 4 * 1024 * 1024
    return int(max(8 * 1024 * 1024, min(ceiling, needed)))


def sc2_pcr_forward(ipts2d: jnp.ndarray, ipts3d: jnp.ndarray) -> jnp.ndarray:
    """Pallas equivalent of SC2_PCR.forward -> confidence [1, num_pts]."""
    n = ipts2d.shape[0]
    n_pad = max(128, ((n + 127) // 128) * 128)   # lane/MXU-aligned size

    p2d = jnp.zeros((n_pad, 2), jnp.float32).at[:n].set(ipts2d.astype(jnp.float32))
    p3d = jnp.zeros((n_pad, 3), jnp.float32).at[:n].set(ipts3d.astype(jnp.float32))
    p2dt = p2d.T   # host-side transpose so the kernel never relayouts
    p3dt = p3d.T

    vmem_limit = _vmem_limit_bytes(n_pad)

    # TODO(synk): on v7x, a row-tiled grid marked "parallel" would shard the
    # VPU-heavy SC construction across both TensorCores; single grid step here.
    conf = pl.pallas_call(
        functools.partial(_sc2_pcr_kernel, n_valid=n),
        out_shape=jax.ShapeDtypeStruct((1, n_pad), jnp.float32),
        grid=(1,),
        in_specs=[
            pl.BlockSpec((n_pad, 2), lambda i: (0, 0)),
            pl.BlockSpec((2, n_pad), lambda i: (0, 0)),
            pl.BlockSpec((n_pad, 3), lambda i: (0, 0)),
            pl.BlockSpec((3, n_pad), lambda i: (0, 0)),
        ],
        out_specs=pl.BlockSpec((1, n_pad), lambda i: (0, 0)),
        compiler_params=pltpu.CompilerParams(
            dimension_semantics=("arbitrary",),
            vmem_limit_bytes=vmem_limit,
        ),
    )(p2d, p2dt, p3d, p3dt)

    return conf[:, :n]   # [bs=1, num_corr]


if __name__ == "__main__":
    key = jax.random.PRNGKey(0)
    k2d, k3d = jax.random.split(key)
    num_pts = 100    # deliberately not 128-aligned to exercise the padding path
    ipts2d = jax.random.uniform(k2d, (num_pts, 2), dtype=jnp.float32)
    ipts3d = jax.random.uniform(k3d, (num_pts, 3), dtype=jnp.float32)

    confidence = sc2_pcr_forward(ipts2d, ipts3d)
    jax.block_until_ready(confidence)

    assert confidence.shape == (1, num_pts)
    assert bool(jnp.all(jnp.isfinite(confidence)))
    # the returned eigenvector is normalized to (approximately) unit length
    assert abs(float(jnp.linalg.norm(confidence)) - 1.0) < 1e-3
    print("KERNEL_OK")
</pallas_src>

<mosaic_0001>
module attributes {stable_mosaic.version = 11 : i64} {
  func.func @_sc2_pcr_kernel(%arg0: i32, %arg1: memref<128x2xf32, #tpu.memory_space<vmem>>, %arg2: memref<2x128xf32, #tpu.memory_space<vmem>>, %arg3: memref<128x3xf32, #tpu.memory_space<vmem>>, %arg4: memref<3x128xf32, #tpu.memory_space<vmem>>, %arg5: memref<1x128xf32, #tpu.memory_space<vmem>>) attributes {dimension_semantics = [#tpu.dimension_semantics<arbitrary>], iteration_bounds = array<i64: 1>, scalar_prefetch = 0 : i64, scratch_operands = 0 : i64, tpu.core_type = #tpu.core_type<tc>, window_params = [{pipeline_mode = #tpu.pipeline_mode<synchronous>, transform_indices = @transform_0, window_bounds = array<i64: 128, 2>}, {pipeline_mode = #tpu.pipeline_mode<synchronous>, transform_indices = @transform_1, window_bounds = array<i64: 2, 128>}, {pipeline_mode = #tpu.pipeline_mode<synchronous>, transform_indices = @transform_2, window_bounds = array<i64: 128, 3>}, {pipeline_mode = #tpu.pipeline_mode<synchronous>, transform_indices = @transform_3, window_bounds = array<i64: 3, 128>}, {pipeline_mode = #tpu.pipeline_mode<synchronous>, transform_indices = @transform_4, window_bounds = array<i64: 1, 128>}]} {
    %c0 = arith.constant 0 : index
    %c0_0 = arith.constant 0 : index
    %0 = vector.load %arg1[%c0, %c0_0] : memref<128x2xf32, #tpu.memory_space<vmem>>, vector<128x2xf32>
    %c0_1 = arith.constant 0 : index
    %c0_2 = arith.constant 0 : index
    %1 = vector.load %arg2[%c0_1, %c0_2] : memref<2x128xf32, #tpu.memory_space<vmem>>, vector<2x128xf32>
    %c0_3 = arith.constant 0 : index
    %c0_4 = arith.constant 0 : index
    %2 = vector.load %arg3[%c0_3, %c0_4] : memref<128x3xf32, #tpu.memory_space<vmem>>, vector<128x3xf32>
    %c0_5 = arith.constant 0 : index
    %c0_6 = arith.constant 0 : index
    %3 = vector.load %arg4[%c0_5, %c0_6] : memref<3x128xf32, #tpu.memory_space<vmem>>, vector<3x128xf32>
    %cst = arith.constant 0.000000e+00 : f32
    %4 = vector.broadcast %cst : f32 to vector<128x128xf32>
    %5 = vector.extract_strided_slice %0 {offsets = [0, 0], sizes = [128, 1], strides = [1, 1]} : vector<128x2xf32> to vector<128x1xf32>
    %6 = vector.extract_strided_slice %1 {offsets = [0, 0], sizes = [1, 128], strides = [1, 1]} : vector<2x128xf32> to vector<1x128xf32>
    %7 = vector.broadcast %5 : vector<128x1xf32> to vector<128x128xf32>
    %8 = vector.broadcast %6 : vector<1x128xf32> to vector<128x128xf32>
    %9 = arith.subf %7, %8 : vector<128x128xf32>
    %10 = arith.mulf %9, %9 : vector<128x128xf32>
    %11 = arith.addf %4, %10 : vector<128x128xf32>
    %12 = vector.extract_strided_slice %0 {offsets = [0, 1], sizes = [128, 1], strides = [1, 1]} : vector<128x2xf32> to vector<128x1xf32>
    %13 = vector.extract_strided_slice %1 {offsets = [1, 0], sizes = [1, 128], strides = [1, 1]} : vector<2x128xf32> to vector<1x128xf32>
    %14 = vector.broadcast %12 : vector<128x1xf32> to vector<128x128xf32>
    %15 = vector.broadcast %13 : vector<1x128xf32> to vector<128x128xf32>
    %16 = arith.subf %14, %15 : vector<128x128xf32>
    %17 = arith.mulf %16, %16 : vector<128x128xf32>
    %18 = arith.addf %11, %17 : vector<128x128xf32>
    %cst_7 = arith.constant 0.000000e+00 : f32
    %19 = vector.broadcast %cst_7 : f32 to vector<128x128xf32>
    %20 = vector.extract_strided_slice %2 {offsets = [0, 0], sizes = [128, 1], strides = [1, 1]} : vector<128x3xf32> to vector<128x1xf32>
    %21 = vector.extract_strided_slice %3 {offsets = [0, 0], sizes = [1, 128], strides = [1, 1]} : vector<3x128xf32> to vector<1x128xf32>
    %22 = vector.broadcast %20 : vector<128x1xf32> to vector<128x128xf32>
    %23 = vector.broadcast %21 : vector<1x128xf32> to vector<128x128xf32>
    %24 = arith.subf %22, %23 : vector<128x128xf32>
    %25 = arith.mulf %24, %24 : vector<128x128xf32>
    %26 = arith.addf %19, %25 : vector<128x128xf32>
    %27 = vector.extract_strided_slice %2 {offsets = [0, 1], sizes = [128, 1], strides = [1, 1]} : vector<128x3xf32> to vector<128x1xf32>
    %28 = vector.extract_strided_slice %3 {offsets = [1, 0], sizes = [1, 128], strides = [1, 1]} : vector<3x128xf32> to vector<1x128xf32>
    %29 = vector.broadcast %27 : vector<128x1xf32> to vector<128x128xf32>
    %30 = vector.broadcast %28 : vector<1x128xf32> to vector<128x128xf32>
    %31 = arith.subf %29, %30 : vector<128x128xf32>
    %32 = arith.mulf %31, %31 : vector<128x128xf32>
    %33 = arith.addf %26, %32 : vector<128x128xf32>
    %34 = vector.extract_strided_slice %2 {offsets = [0, 2], sizes = [128, 1], strides = [1, 1]} : vector<128x3xf32> to vector<128x1xf32>
    %35 = vector.extract_strided_slice %3 {offsets = [2, 0], sizes = [1, 128], strides = [1, 1]} : vector<3x128xf32> to vector<1x128xf32>
    %36 = vector.broadcast %34 : vector<128x1xf32> to vector<128x128xf32>
    %37 = vector.broadcast %35 : vector<1x128xf32> to vector<128x128xf32>
    %38 = arith.subf %36, %37 : vector<128x128xf32>
    %39 = arith.mulf %38, %38 : vector<128x128xf32>
    %40 = arith.addf %33, %39 : vector<128x128xf32>
    %41 = arith.addf %18, %40 : vector<128x128xf32>
    %42 = arith.mulf %18, %40 : vector<128x128xf32>
    %43 = math.sqrt %42 : vector<128x128xf32>
    %cst_8 = arith.constant 2.000000e+00 : f32
    %44 = vector.broadcast %cst_8 : f32 to vector<128x128xf32>
    %45 = arith.mulf %44, %43 : vector<128x128xf32>
    %46 = arith.subf %41, %45 : vector<128x128xf32>
    %cst_9 = arith.constant 1.000000e+02 : f32
    %47 = vector.broadcast %cst_9 : f32 to vector<128x128xf32>
    %48 = arith.mulf %46, %47 : vector<128x128xf32>
    %cst_10 = arith.constant 1.000000e+00 : f32
    %49 = vector.broadcast %cst_10 : f32 to vector<128x128xf32>
    %50 = arith.subf %49, %48 : vector<128x128xf32>
    %cst_11 = arith.constant 0.000000e+00 : f32
    %51 = vector.broadcast %cst_11 : f32 to vector<128x128xf32>
    %52 = arith.maximumf %50, %51 : vector<128x128xf32>
    %53 = tpu.iota {dimensions = array<i32: 0>} : vector<128x128xi32>
    %54 = tpu.iota {dimensions = array<i32: 1>} : vector<128x128xi32>
    %c100_i32 = arith.constant 100 : i32
    %55 = vector.broadcast %c100_i32 : i32 to vector<128x128xi32>
    %56 = arith.cmpi slt, %53, %55 : vector<128x128xi32>
    %c100_i32_12 = arith.constant 100 : i32
    %57 = vector.broadcast %c100_i32_12 : i32 to vector<128x128xi32>
    %58 = arith.cmpi slt, %54, %57 : vector<128x128xi32>
    %59 = arith.andi %56, %58 : vector<128x128xi1>
    %cst_13 = arith.constant 0.000000e+00 : f32
    %60 = vector.broadcast %cst_13 : f32 to vector<128x128xf32>
    %61 = arith.select %59, %52, %60 : vector<128x128xi1>, vector<128x128xf32>
    %62 = arith.truncf %61 : vector<128x128xf32> to vector<128x128xbf16>
    %cst_14 = arith.constant 1.000000e+00 : f32
    %63 = vector.broadcast %cst_14 : f32 to vector<8x128xf32>
    %64 = arith.truncf %63 : vector<8x128xf32> to vector<8x128xbf16>
    %cst_15 = arith.constant dense<0.000000e+00> : vector<8x128xf32>
    %65 = tpu.matmul %64, %62, %cst_15 {dimension_numbers = #tpu.dot_dimension_numbers<[1], [0], [0], [1], [0, 0, 1, 1], [], []>} : vector<8x128xbf16>, vector<128x128xbf16>, vector<8x128xf32> -> vector<8x128xf32>
    %66 = arith.truncf %65 : vector<8x128xf32> to vector<8x128xbf16>
    %cst_16 = arith.constant dense<0.000000e+00> : vector<8x128xf32>
    %67 = tpu.matmul %66, %62, %cst_16 {dimension_numbers = #tpu.dot_dimension_numbers<[1], [0], [0], [1], [0, 0, 1, 1], [], []>} : vector<8x128xbf16>, vector<128x128xbf16>, vector<8x128xf32> -> vector<8x128xf32>
    %68 = arith.mulf %67, %67 : vector<8x128xf32>
    %cst_17 = arith.constant dense<0.000000e+00> : vector<8xf32>
    %69 = vector.multi_reduction <add>, %68, %cst_17 [1] : vector<8x128xf32> to vector<8xf32>
    %70 = vector.shape_cast %69 : vector<8xf32> to vector<8x1xf32>
    %cst_18 = arith.constant 9.99999996E-13 : f32
    %71 = vector.broadcast %cst_18 : f32 to vector<8x1xf32>
    %72 = arith.addf %70, %71 : vector<8x1xf32>
    %73 = math.rsqrt %72 : vector<8x1xf32>
    %74 = vector.broadcast %73 : vector<8x1xf32> to vector<8x128xf32>
    %75 = arith.mulf %67, %74 : vector<8x128xf32>
    %76 = arith.truncf %75 : vector<8x128xf32> to vector<8x128xbf16>
    %cst_19 = arith.constant dense<0.000000e+00> : vector<8x128xf32>
    %77 = tpu.matmul %76, %62, %cst_19 {dimension_numbers = #tpu.dot_dimension_numbers<[1], [0], [0], [1], [0, 0, 1, 1], [], []>} : vector<8x128xbf16>, vector<128x128xbf16>, vector<8x128xf32> -> vector<8x128xf32>
    %78 = arith.truncf %77 : vector<8x128xf32> to vector<8x128xbf16>
    %cst_20 = arith.constant dense<0.000000e+00> : vector<8x128xf32>
    %79 = tpu.matmul %78, %62, %cst_20 {dimension_numbers = #tpu.dot_dimension_numbers<[1], [0], [0], [1], [0, 0, 1, 1], [], []>} : vector<8x128xbf16>, vector<128x128xbf16>, vector<8x128xf32> -> vector<8x128xf32>
    %80 = arith.mulf %79, %79 : vector<8x128xf32>
    %cst_21 = arith.constant dense<0.000000e+00> : vector<8xf32>
    %81 = vector.multi_reduction <add>, %80, %cst_21 [1] : vector<8x128xf32> to vector<8xf32>
    %82 = vector.shape_cast %81 : vector<8xf32> to vector<8x1xf32>
    %cst_22 = arith.constant 9.99999996E-13 : f32
    %83 = vector.broadcast %cst_22 : f32 to vector<8x1xf32>
    %84 = arith.addf %82, %83 : vector<8x1xf32>
    %85 = math.rsqrt %84 : vector<8x1xf32>
    %86 = vector.broadcast %85 : vector<8x1xf32> to vector<8x128xf32>
    %87 = arith.mulf %79, %86 : vector<8x128xf32>
    %88 = arith.truncf %87 : vector<8x128xf32> to vector<8x128xbf16>
    %cst_23 = arith.constant dense<0.000000e+00> : vector<8x128xf32>
    %89 = tpu.matmul %88, %62, %cst_23 {dimension_numbers = #tpu.dot_dimension_numbers<[1], [0], [0], [1], [0, 0, 1, 1], [], []>} : vector<8x128xbf16>, vector<128x128xbf16>, vector<8x128xf32> -> vector<8x128xf32>
    %90 = arith.truncf %89 : vector<8x128xf32> to vector<8x128xbf16>
    %cst_24 = arith.constant dense<0.000000e+00> : vector<8x128xf32>
    %91 = tpu.matmul %90, %62, %cst_24 {dimension_numbers = #tpu.dot_dimension_numbers<[1], [0], [0], [1], [0, 0, 1, 1], [], []>} : vector<8x128xbf16>, vector<128x128xbf16>, vector<8x128xf32> -> vector<8x128xf32>
    %92 = arith.mulf %91, %91 : vector<8x128xf32>
    %cst_25 = arith.constant dense<0.000000e+00> : vector<8xf32>
    %93 = vector.multi_reduction <add>, %92, %cst_25 [1] : vector<8x128xf32> to vector<8xf32>
    %94 = vector.shape_cast %93 : vector<8xf32> to vector<8x1xf32>
    %cst_26 = arith.constant 9.99999996E-13 : f32
    %95 = vector.broadcast %cst_26 : f32 to vector<8x1xf32>
    %96 = arith.addf %94, %95 : vector<8x1xf32>
    %97 = math.rsqrt %96 : vector<8x1xf32>
    %98 = vector.broadcast %97 : vector<8x1xf32> to vector<8x128xf32>
    %99 = arith.mulf %91, %98 : vector<8x128xf32>
    %100 = arith.truncf %99 : vector<8x128xf32> to vector<8x128xbf16>
    %cst_27 = arith.constant dense<0.000000e+00> : vector<8x128xf32>
    %101 = tpu.matmul %100, %62, %cst_27 {dimension_numbers = #tpu.dot_dimension_numbers<[1], [0], [0], [1], [0, 0, 1, 1], [], []>} : vector<8x128xbf16>, vector<128x128xbf16>, vector<8x128xf32> -> vector<8x128xf32>
    %102 = arith.truncf %101 : vector<8x128xf32> to vector<8x128xbf16>
    %cst_28 = arith.constant dense<0.000000e+00> : vector<8x128xf32>
    %103 = tpu.matmul %102, %62, %cst_28 {dimension_numbers = #tpu.dot_dimension_numbers<[1], [0], [0], [1], [0, 0, 1, 1], [], []>} : vector<8x128xbf16>, vector<128x128xbf16>, vector<8x128xf32> -> vector<8x128xf32>
    %104 = arith.mulf %103, %103 : vector<8x128xf32>
    %cst_29 = arith.constant dense<0.000000e+00> : vector<8xf32>
    %105 = vector.multi_reduction <add>, %104, %cst_29 [1] : vector<8x128xf32> to vector<8xf32>
    %106 = vector.shape_cast %105 : vector<8xf32> to vector<8x1xf32>
    %cst_30 = arith.constant 9.99999996E-13 : f32
    %107 = vector.broadcast %cst_30 : f32 to vector<8x1xf32>
    %108 = arith.addf %106, %107 : vector<8x1xf32>
    %109 = math.rsqrt %108 : vector<8x1xf32>
    %110 = vector.broadcast %109 : vector<8x1xf32> to vector<8x128xf32>
    %111 = arith.mulf %103, %110 : vector<8x128xf32>
    %112 = arith.truncf %111 : vector<8x128xf32> to vector<8x128xbf16>
    %cst_31 = arith.constant dense<0.000000e+00> : vector<8x128xf32>
    %113 = tpu.matmul %112, %62, %cst_31 {dimension_numbers = #tpu.dot_dimension_numbers<[1], [0], [0], [1], [0, 0, 1, 1], [], []>} : vector<8x128xbf16>, vector<128x128xbf16>, vector<8x128xf32> -> vector<8x128xf32>
    %114 = arith.truncf %113 : vector<8x128xf32> to vector<8x128xbf16>
    %cst_32 = arith.constant dense<0.000000e+00> : vector<8x128xf32>
    %115 = tpu.matmul %114, %62, %cst_32 {dimension_numbers = #tpu.dot_dimension_numbers<[1], [0], [0], [1], [0, 0, 1, 1], [], []>} : vector<8x128xbf16>, vector<128x128xbf16>, vector<8x128xf32> -> vector<8x128xf32>
    %116 = arith.mulf %115, %115 : vector<8x128xf32>
    %cst_33 = arith.constant dense<0.000000e+00> : vector<8xf32>
    %117 = vector.multi_reduction <add>, %116, %cst_33 [1] : vector<8x128xf32> to vector<8xf32>
    %118 = vector.shape_cast %117 : vector<8xf32> to vector<8x1xf32>
    %119 = math.sqrt %118 : vector<8x1xf32>
    %cst_34 = arith.constant 9.99999997E-7 : f32
    %120 = vector.broadcast %cst_34 : f32 to vector<8x1xf32>
    %121 = arith.addf %119, %120 : vector<8x1xf32>
    %122 = vector.broadcast %121 : vector<8x1xf32> to vector<8x128xf32>
    %123 = arith.divf %115, %122 : vector<8x128xf32>
    %124 = vector.extract_strided_slice %123 {offsets = [0, 0], sizes = [1, 128], strides = [1, 1]} : vector<8x128xf32> to vector<1x128xf32>
    %c0_35 = arith.constant 0 : index
    %c0_36 = arith.constant 0 : index
    %125 = vector.load %arg5[%c0_35, %c0_36] : memref<1x128xf32, #tpu.memory_space<vmem>>, vector<1x128xf32>
    tpu.vector_store %arg5[%c0_35, %c0_36], %124 {strides = array<i32>} : memref<1x128xf32, #tpu.memory_space<vmem>>, vector<1x128xf32>,
    return
  }
  func.func @transform_0(%arg0: i32) -> (i32, i32) {
    %c0_i32 = arith.constant 0 : i32
    %c0_i32_0 = arith.constant 0 : i32
    %c0_i32_1 = arith.constant 0 : i32
    return %c0_i32, %c0_i32_0 : i32, i32
  }
  func.func @transform_1(%arg0: i32) -> (i32, i32) {
    %c0_i32 = arith.constant 0 : i32
    %c0_i32_0 = arith.constant 0 : i32
    %c0_i32_1 = arith.constant 0 : i32
    return %c0_i32, %c0_i32_0 : i32, i32
  }
  func.func @transform_2(%arg0: i32) -> (i32, i32) {
    %c0_i32 = arith.constant 0 : i32
    %c0_i32_0 = arith.constant 0 : i32
    %c0_i32_1 = arith.constant 0 : i32
    return %c0_i32, %c0_i32_0 : i32, i32
  }
  func.func @transform_3(%arg0: i32) -> (i32, i32) {
    %c0_i32 = arith.constant 0 : i32
    %c0_i32_0 = arith.constant 0 : i32
    %c0_i32_1 = arith.constant 0 : i32
    return %c0_i32, %c0_i32_0 : i32, i32
  }
  func.func @transform_4(%arg0: i32) -> (i32, i32) {
    %c0_i32 = arith.constant 0 : i32
    %c0_i32_0 = arith.constant 0 : i32
    %c0_i32_1 = arith.constant 0 : i32
    return %c0_i32, %c0_i32_0 : i32, i32
  }
}

</mosaic_0001>

<llo_original>
// kernel: tpu_custom_call.1
$region0: #{tpu_custom_call.1}
  #allocation0 [shape = 'u32[]', space=smem, size = 0x4, offset = 0x4, fixed_abs, tag = 'smem constant byte address 0x4 - core index']
  #allocation1 [shape = 'u32[72,128]{1,0:T(1,128)}', space=vmem, size = 0x9000, scoped, tag = 'internal scratch']
  %s0 = inlined_call_operand.vmem [shape: f32[128,2], index: 0, kind: input, shape index: {}]
  %s1 = inlined_call_operand.vmem [shape: f32[2,128], index: 1, kind: input, shape index: {}]
  %s2 = inlined_call_operand.vmem [shape: f32[128,3], index: 2, kind: input, shape index: {}]
  %s3 = inlined_call_operand.vmem [shape: f32[3,128], index: 3, kind: input, shape index: {}]
  %s4 = inlined_call_operand.hbm [shape: f32[1,128], index: 4, kind: output, shape index: {}]
  %s5 = sld [smem:[#allocation0]]
  $region26: #{tpu_custom_call.1} parent=0
    _
  %s7 = ssub.s32 1, %s5
  %s8 = scalar_select 0, %s7, %s5
  $region1: #{tpu_custom_call.1} parent=0
    #allocation2 [shape = 'u8[512]{0}', space=vmem, size = 0x400, scoped, tag = 'output window, operand 0, single buffered']
    #allocation3 [shape = 's32[1]{0}', space=sflag, size = 0x4, scoped, tag = 'scoped memory for tpu_custom_call.1']
    %9 = vsyncpa [#allocation3], 0
    // Predicated region
    $region2: #{tpu_custom_call.1} parent=1 // pred_check
      _
    $region3: #{tpu_custom_call.1} parent=1 // pred_check_branch
      %11 = sbr.rel (0) target = $region5
    $region4: #{tpu_custom_call.1} parent=1 // pred_region
      _
    $region5: #{tpu_custom_call.1} parent=1 // pred_fallthru
      _
    // Predicated region
    $region6: #{tpu_custom_call.1} parent=1 // pred_check
      _
    $region7: #{tpu_custom_call.1} parent=1 // pred_check_branch
      %13 = sbr.rel (0) target = $region9
    $region8: #{tpu_custom_call.1} parent=1 // pred_region
      _
    $region9: #{tpu_custom_call.1} parent=1 // pred_fallthru
      _
    // Predicated region
    $region10: #{tpu_custom_call.1} parent=1 // pred_check
      _
    $region11: #{tpu_custom_call.1} parent=1 // pred_check_branch
      %15 = sbr.rel (0) target = $region13
    $region12: #{tpu_custom_call.1} parent=1 // pred_region
      _
    $region13: #{tpu_custom_call.1} parent=1 // pred_fallthru
      _
    // Predicated region
    $region14: #{tpu_custom_call.1} parent=1 // pred_check
      _
    $region15: #{tpu_custom_call.1} parent=1 // pred_check_branch
      %17 = sbr.rel (0) target = $region17
    $region16: #{tpu_custom_call.1} parent=1 // pred_region
      _
    $region17: #{tpu_custom_call.1} parent=1 // pred_fallthru
      _
    %v19 = vld [vmem:[%s0] sm:$0xff]
    %v20 = vld [vmem:[%s0 + $0x8] sm:$0xff]
    %v21 = vld [vmem:[%s0 + $0x10] sm:$0xff]
    %v22 = vld [vmem:[%s0 + $0x18] sm:$0xff]
    %v23 = vld [vmem:[%s0 + $0x20] sm:$0xff]
    %v24 = vld [vmem:[%s0 + $0x28] sm:$0xff]
    %v25 = vld [vmem:[%s0 + $0x30] sm:$0xff]
    %v26 = vld [vmem:[%s0 + $0x38] sm:$0xff]
    %v27 = vld [vmem:[%s0 + $0x40] sm:$0xff]
    %v28 = vld [vmem:[%s0 + $0x48] sm:$0xff]
    %v29 = vld [vmem:[%s0 + $0x50] sm:$0xff]
    %v30 = vld [vmem:[%s0 + $0x58] sm:$0xff]
    %v31 = vld [vmem:[%s0 + $0x60] sm:$0xff]
    %v32 = vld [vmem:[%s0 + $0x68] sm:$0xff]
    %v33 = vld [vmem:[%s0 + $0x70] sm:$0xff]
    %v34 = vld [vmem:[%s0 + $0x78] sm:$0xff]
    %v35 = vld [vmem:[%s1] sm:$0x3]
    %v36 = vld [vmem:[%s2] sm:$0xff]
    %v37 = vld [vmem:[%s2 + $0x8] sm:$0xff]
    %v38 = vld [vmem:[%s2 + $0x10] sm:$0xff]
    %v39 = vld [vmem:[%s2 + $0x18] sm:$0xff]
    %v40 = vld [vmem:[%s2 + $0x20] sm:$0xff]
    %v41 = vld [vmem:[%s2 + $0x28] sm:$0xff]
    %v42 = vld [vmem:[%s2 + $0x30] sm:$0xff]
    %v43 = vld [vmem:[%s2 + $0x38] sm:$0xff]
    %v44 = vld [vmem:[%s2 + $0x40] sm:$0xff]
    %v45 = vld [vmem:[%s2 + $0x48] sm:$0xff]
    %v46 = vld [vmem:[%s2 + $0x50] sm:$0xff]
    %v47 = vld [vmem:[%s2 + $0x58] sm:$0xff]
    %v48 = vld [vmem:[%s2 + $0x60] sm:$0xff]
    %v49 = vld [vmem:[%s2 + $0x68] sm:$0xff]
    %v50 = vld [vmem:[%s2 + $0x70] sm:$0xff]
    %v51 = vld [vmem:[%s2 + $0x78] sm:$0xff]
    %v52 = vld [vmem:[%s3] sm:$0x7]
    %54 = vset.pattern.permute.xlu0 0
    %55 = vperm.xlu0 %54, %v19
    %v56 = vpop.permute.xlu0 %55
    %59 = vset.pattern.permute.xlu0 0
    %60 = vperm.xlu0 %59, %v20
    %v61 = vpop.permute.xlu0 %60
    %64 = vset.pattern.permute.xlu0 0
    %65 = vperm.xlu0 %64, %v21
    %v66 = vpop.permute.xlu0 %65
    %69 = vset.pattern.permute.xlu0 0
    %70 = vperm.xlu0 %69, %v22
    %v71 = vpop.permute.xlu0 %70
    %74 = vset.pattern.permute.xlu0 0
    %75 = vperm.xlu0 %74, %v23
    %v76 = vpop.permute.xlu0 %75
    %79 = vset.pattern.permute.xlu0 0
    %80 = vperm.xlu0 %79, %v24
    %v81 = vpop.permute.xlu0 %80
    %84 = vset.pattern.permute.xlu0 0
    %85 = vperm.xlu0 %84, %v25
    %v86 = vpop.permute.xlu0 %85
    %89 = vset.pattern.permute.xlu0 0
    %90 = vperm.xlu0 %89, %v26
    %v91 = vpop.permute.xlu0 %90
    %94 = vset.pattern.permute.xlu0 0
    %95 = vperm.xlu0 %94, %v27
    %v96 = vpop.permute.xlu0 %95
    %99 = vset.pattern.permute.xlu0 0
    %100 = vperm.xlu0 %99, %v28
    %v101 = vpop.permute.xlu0 %100
    %104 = vset.pattern.permute.xlu0 0
    %105 = vperm.xlu0 %104, %v29
    %v106 = vpop.permute.xlu0 %105
    %109 = vset.pattern.permute.xlu0 0
    %110 = vperm.xlu0 %109, %v30
    %v111 = vpop.permute.xlu0 %110
    %114 = vset.pattern.permute.xlu0 0
    %115 = vperm.xlu0 %114, %v31
    %v116 = vpop.permute.xlu0 %115
    %119 = vset.pattern.permute.xlu0 0
    %120 = vperm.xlu0 %119, %v32
    %v121 = vpop.permute.xlu0 %120
    %124 = vset.pattern.permute.xlu0 0
    %125 = vperm.xlu0 %124, %v33
    %v126 = vpop.permute.xlu0 %125
    %129 = vset.pattern.permute.xlu0 0
    %130 = vperm.xlu0 %129, %v34
    %v131 = vpop.permute.xlu0 %130
    %v133 = vperm.slane %v35, 0
    %v134 = vsub.f32 %v56, %v133
    %v135 = vsub.f32 %v61, %v133
    %v136 = vsub.f32 %v66, %v133
    %v137 = vsub.f32 %v71, %v133
    %v138 = vsub.f32 %v76, %v133
    %v139 = vsub.f32 %v81, %v133
    %v140 = vsub.f32 %v86, %v133
    %v141 = vsub.f32 %v91, %v133
    %v142 = vsub.f32 %v96, %v133
    %v143 = vsub.f32 %v101, %v133
    %v144 = vsub.f32 %v106, %v133
    %v145 = vsub.f32 %v111, %v133
    %v146 = vsub.f32 %v116, %v133
    %v147 = vsub.f32 %v121, %v133
    %v148 = vsub.f32 %v126, %v133
    %v149 = vsub.f32 %v131, %v133
    %v150 = vmul.f32 %v134, %v134
    %v151 = vmul.f32 %v135, %v135
    %v152 = vmul.f32 %v136, %v136
    %v153 = vmul.f32 %v137, %v137
    %v154 = vmul.f32 %v138, %v138
    %v155 = vmul.f32 %v139, %v139
    %v156 = vmul.f32 %v140, %v140
    %v157 = vmul.f32 %v141, %v141
    %v158 = vmul.f32 %v142, %v142
    %v159 = vmul.f32 %v143, %v143
    %v160 = vmul.f32 %v144, %v144
    %v161 = vmul.f32 %v145, %v145
    %v162 = vmul.f32 %v146, %v146
    %v163 = vmul.f32 %v147, %v147
    %v164 = vmul.f32 %v148, %v148
    %v165 = vmul.f32 %v149, %v149
    %v166 = vadd.f32 %v150, 0.0
    %v167 = vadd.f32 %v151, 0.0
    %v168 = vadd.f32 %v152, 0.0
    %v169 = vadd.f32 %v153, 0.0
    %v170 = vadd.f32 %v154, 0.0
    %v171 = vadd.f32 %v155, 0.0
    %v172 = vadd.f32 %v156, 0.0
    %v173 = vadd.f32 %v157, 0.0
    %v174 = vadd.f32 %v158, 0.0
    %v175 = vadd.f32 %v159, 0.0
    %v176 = vadd.f32 %v160, 0.0
    %v177 = vadd.f32 %v161, 0.0
    %v178 = vadd.f32 %v162, 0.0
    %v179 = vadd.f32 %v163, 0.0
    %v180 = vadd.f32 %v164, 0.0
    %v181 = vadd.f32 %v165, 0.0
    %182 = vset.pattern.permute.xlu0 1
    %183 = vperm.xlu0 %182, %v19
    %v184 = vpop.permute.xlu0 %183
    %186 = vset.pattern.permute.xlu0 1
    %187 = vperm.xlu0 %186, %v20
    %v188 = vpop.permute.xlu0 %187
    %190 = vset.pattern.permute.xlu0 1
    %191 = vperm.xlu0 %190, %v21
    %v192 = vpop.permute.xlu0 %191
    %194 = vset.pattern.permute.xlu0 1
    %195 = vperm.xlu0 %194, %v22
    %v196 = vpop.permute.xlu0 %195
    %198 = vset.pattern.permute.xlu0 1
    %199 = vperm.xlu0 %198, %v23
    %v200 = vpop.permute.xlu0 %199
    %202 = vset.pattern.permute.xlu0 1
    %203 = vperm.xlu0 %202, %v24
    %v204 = vpop.permute.xlu0 %203
    %206 = vset.pattern.permute.xlu0 1
    %207 = vperm.xlu0 %206, %v25
    %v208 = vpop.permute.xlu0 %207
    %210 = vset.pattern.permute.xlu0 1
    %211 = vperm.xlu0 %210, %v26
    %v212 = vpop.permute.xlu0 %211
    %214 = vset.pattern.permute.xlu0 1
    %215 = vperm.xlu0 %214, %v27
    %v216 = vpop.permute.xlu0 %215
    %218 = vset.pattern.permute.xlu0 1
    %219 = vperm.xlu0 %218, %v28
    %v220 = vpop.permute.xlu0 %219
    %222 = vset.pattern.permute.xlu0 1
    %223 = vperm.xlu0 %222, %v29
    %v224 = vpop.permute.xlu0 %223
    %226 = vset.pattern.permute.xlu0 1
    %227 = vperm.xlu0 %226, %v30
    %v228 = vpop.permute.xlu0 %227
    %230 = vset.pattern.permute.xlu0 1
    %231 = vperm.xlu0 %230, %v31
    %v232 = vpop.permute.xlu0 %231
    %234 = vset.pattern.permute.xlu0 1
    %235 = vperm.xlu0 %234, %v32
    %v236 = vpop.permute.xlu0 %235
    %238 = vset.pattern.permute.xlu0 1
    %239 = vperm.xlu0 %238, %v33
    %v240 = vpop.permute.xlu0 %239
    %242 = vset.pattern.permute.xlu0 1
    %243 = vperm.xlu0 %242, %v34
    %v244 = vpop.permute.xlu0 %243
    %v246 = vperm.slane %v35, 1
    %v247 = vsub.f32 %v184, %v246
    %v248 = vsub.f32 %v188, %v246
    %v249 = vsub.f32 %v192, %v246
    %v250 = vsub.f32 %v196, %v246
    %v251 = vsub.f32 %v200, %v246
    %v252 = vsub.f32 %v204, %v246
    %v253 = vsub.f32 %v208, %v246
    %v254 = vsub.f32 %v212, %v246
    %v255 = vsub.f32 %v216, %v246
    %v256 = vsub.f32 %v220, %v246
    %v257 = vsub.f32 %v224, %v246
    %v258 = vsub.f32 %v228, %v246
    %v259 = vsub.f32 %v232, %v246
    %v260 = vsub.f32 %v236, %v246
    %v261 = vsub.f32 %v240, %v246
    %v262 = vsub.f32 %v244, %v246
    %v263 = vmul.f32 %v247, %v247
    %v264 = vmul.f32 %v248, %v248
    %v265 = vmul.f32 %v249, %v249
    %v266 = vmul.f32 %v250, %v250
    %v267 = vmul.f32 %v251, %v251
    %v268 = vmul.f32 %v252, %v252
    %v269 = vmul.f32 %v253, %v253
    %v270 = vmul.f32 %v254, %v254
    %v271 = vmul.f32 %v255, %v255
    %v272 = vmul.f32 %v256, %v256
    %v273 = vmul.f32 %v257, %v257
    %v274 = vmul.f32 %v258, %v258
    %v275 = vmul.f32 %v259, %v259
    %v276 = vmul.f32 %v260, %v260
    %v277 = vmul.f32 %v261, %v261
    %v278 = vmul.f32 %v262, %v262
    %v279 = vadd.f32 %v166, %v263
    %v280 = vadd.f32 %v167, %v264
    %v281 = vadd.f32 %v168, %v265
    %v282 = vadd.f32 %v169, %v266
    %v283 = vadd.f32 %v170, %v267
    %v284 = vadd.f32 %v171, %v268
    %v285 = vadd.f32 %v172, %v269
    %v286 = vadd.f32 %v173, %v270
    %v287 = vadd.f32 %v174, %v271
    %v288 = vadd.f32 %v175, %v272
    %v289 = vadd.f32 %v176, %v273
    %v290 = vadd.f32 %v177, %v274
    %v291 = vadd.f32 %v178, %v275
    %v292 = vadd.f32 %v179, %v276
    %v293 = vadd.f32 %v180, %v277
    %v294 = vadd.f32 %v181, %v278
    %296 = vset.pattern.permute.xlu0 0
    %297 = vperm.xlu0 %296, %v36
    %v298 = vpop.permute.xlu0 %297
    %301 = vset.pattern.permute.xlu0 0
    %302 = vperm.xlu0 %301, %v37
    %v303 = vpop.permute.xlu0 %302
    %306 = vset.pattern.permute.xlu0 0
    %307 = vperm.xlu0 %306, %v38
    %v308 = vpop.permute.xlu0 %307
    %311 = vset.pattern.permute.xlu0 0
    %312 = vperm.xlu0 %311, %v39
    %v313 = vpop.permute.xlu0 %312
    %316 = vset.pattern.permute.xlu0 0
    %317 = vperm.xlu0 %316, %v40
    %v318 = vpop.permute.xlu0 %317
    %321 = vset.pattern.permute.xlu0 0
    %322 = vperm.xlu0 %321, %v41
    %v323 = vpop.permute.xlu0 %322
    %326 = vset.pattern.permute.xlu0 0
    %327 = vperm.xlu0 %326, %v42
    %v328 = vpop.permute.xlu0 %327
    %331 = vset.pattern.permute.xlu0 0
    %332 = vperm.xlu0 %331, %v43
    %v333 = vpop.permute.xlu0 %332
    %336 = vset.pattern.permute.xlu0 0
    %337 = vperm.xlu0 %336, %v44
    %v338 = vpop.permute.xlu0 %337
    %341 = vset.pattern.permute.xlu0 0
    %342 = vperm.xlu0 %341, %v45
    %v343 = vpop.permute.xlu0 %342
    %346 = vset.pattern.permute.xlu0 0
    %347 = vperm.xlu0 %346, %v46
    %v348 = vpop.permute.xlu0 %347
    %351 = vset.pattern.permute.xlu0 0
    %352 = vperm.xlu0 %351, %v47
    %v353 = vpop.permute.xlu0 %352
    %356 = vset.pattern.permute.xlu0 0
    %357 = vperm.xlu0 %356, %v48
    %v358 = vpop.permute.xlu0 %357
    %361 = vset.pattern.permute.xlu0 0
    %362 = vperm.xlu0 %361, %v49
    %v363 = vpop.permute.xlu0 %362
    %366 = vset.pattern.permute.xlu0 0
    %367 = vperm.xlu0 %366, %v50
    %v368 = vpop.permute.xlu0 %367
    %371 = vset.pattern.permute.xlu0 0
    %372 = vperm.xlu0 %371, %v51
    %v373 = vpop.permute.xlu0 %372
    %v375 = vperm.slane %v52, 0
    %v376 = vsub.f32 %v298, %v375
    %v377 = vsub.f32 %v303, %v375
    %v378 = vsub.f32 %v308, %v375
    %v379 = vsub.f32 %v313, %v375
    %v380 = vsub.f32 %v318, %v375
    %v381 = vsub.f32 %v323, %v375
    %v382 = vsub.f32 %v328, %v375
    %v383 = vsub.f32 %v333, %v375
    %v384 = vsub.f32 %v338, %v375
    %v385 = vsub.f32 %v343, %v375
    %v386 = vsub.f32 %v348, %v375
    %v387 = vsub.f32 %v353, %v375
    %v388 = vsub.f32 %v358, %v375
    %v389 = vsub.f32 %v363, %v375
    %v390 = vsub.f32 %v368, %v375
    %v391 = vsub.f32 %v373, %v375
    %v392 = vmul.f32 %v376, %v376
    %v393 = vmul.f32 %v377, %v377
    %v394 = vmul.f32 %v378, %v378
    %v395 = vmul.f32 %v379, %v379
    %v396 = vmul.f32 %v380, %v380
    %v397 = vmul.f32 %v381, %v381
    %v398 = vmul.f32 %v382, %v382
    %v399 = vmul.f32 %v383, %v383
    %v400 = vmul.f32 %v384, %v384
    %v401 = vmul.f32 %v385, %v385
    %v402 = vmul.f32 %v386, %v386
    %v403 = vmul.f32 %v387, %v387
    %v404 = vmul.f32 %v388, %v388
    %v405 = vmul.f32 %v389, %v389
    %v406 = vmul.f32 %v390, %v390
    %v407 = vmul.f32 %v391, %v391
    %v408 = vadd.f32 %v392, 0.0
    %v409 = vadd.f32 %v393, 0.0
    %v410 = vadd.f32 %v394, 0.0
    %v411 = vadd.f32 %v395, 0.0
    %v412 = vadd.f32 %v396, 0.0
    %v413 = vadd.f32 %v397, 0.0
    %v414 = vadd.f32 %v398, 0.0
    %v415 = vadd.f32 %v399, 0.0
    %v416 = vadd.f32 %v400, 0.0
    %v417 = vadd.f32 %v401, 0.0
    %v418 = vadd.f32 %v402, 0.0
    %v419 = vadd.f32 %v403, 0.0
    %v420 = vadd.f32 %v404, 0.0
    %v421 = vadd.f32 %v405, 0.0
    %v422 = vadd.f32 %v406, 0.0
    %v423 = vadd.f32 %v407, 0.0
    %424 = vset.pattern.permute.xlu0 1
    %425 = vperm.xlu0 %424, %v36
    %v426 = vpop.permute.xlu0 %425
    %428 = vset.pattern.permute.xlu0 1
    %429 = vperm.xlu0 %428, %v37
    %v430 = vpop.permute.xlu0 %429
    %432 = vset.pattern.permute.xlu0 1
    %433 = vperm.xlu0 %432, %v38
    %v434 = vpop.permute.xlu0 %433
    %436 = vset.pattern.permute.xlu0 1
    %437 = vperm.xlu0 %436, %v39
    %v438 = vpop.permute.xlu0 %437
    %440 = vset.pattern.permute.xlu0 1
    %441 = vperm.xlu0 %440, %v40
    %v442 = vpop.permute.xlu0 %441
    %444 = vset.pattern.permute.xlu0 1
    %445 = vperm.xlu0 %444, %v41
    %v446 = vpop.permute.xlu0 %445
    %448 = vset.pattern.permute.xlu0 1
    %449 = vperm.xlu0 %448, %v42
    %v450 = vpop.permute.xlu0 %449
    %452 = vset.pattern.permute.xlu0 1
    %453 = vperm.xlu0 %452, %v43
    %v454 = vpop.permute.xlu0 %453
    %456 = vset.pattern.permute.xlu0 1
    %457 = vperm.xlu0 %456, %v44
    %v458 = vpop.permute.xlu0 %457
    %460 = vset.pattern.permute.xlu0 1
    %461 = vperm.xlu0 %460, %v45
    %v462 = vpop.permute.xlu0 %461
    %464 = vset.pattern.permute.xlu0 1
    %465 = vperm.xlu0 %464, %v46
    %v466 = vpop.permute.xlu0 %465
    %468 = vset.pattern.permute.xlu0 1
    %469 = vperm.xlu0 %468, %v47
    %v470 = vpop.permute.xlu0 %469
    %472 = vset.pattern.permute.xlu0 1
    %473 = vperm.xlu0 %472, %v48
    %v474 = vpop.permute.xlu0 %473
    %476 = vset.pattern.permute.xlu0 1
    %477 = vperm.xlu0 %476, %v49
    %v478 = vpop.permute.xlu0 %477
    %480 = vset.pattern.permute.xlu0 1
    %481 = vperm.xlu0 %480, %v50
    %v482 = vpop.permute.xlu0 %481
    %484 = vset.pattern.permute.xlu0 1
    %485 = vperm.xlu0 %484, %v51
    %v486 = vpop.permute.xlu0 %485
    %v488 = vperm.slane %v52, 1
    %v489 = vsub.f32 %v426, %v488
    %v490 = vsub.f32 %v430, %v488
    %v491 = vsub.f32 %v434, %v488
    %v492 = vsub.f32 %v438, %v488
    %v493 = vsub.f32 %v442, %v488
    %v494 = vsub.f32 %v446, %v488
    %v495 = vsub.f32 %v450, %v488
    %v496 = vsub.f32 %v454, %v488
    %v497 = vsub.f32 %v458, %v488
    %v498 = vsub.f32 %v462, %v488
    %v499 = vsub.f32 %v466, %v488
    %v500 = vsub.f32 %v470, %v488
    %v501 = vsub.f32 %v474, %v488
    %v502 = vsub.f32 %v478, %v488
    %v503 = vsub.f32 %v482, %v488
    %v504 = vsub.f32 %v486, %v488
    %v505 = vmul.f32 %v489, %v489
    %v506 = vmul.f32 %v490, %v490
    %v507 = vmul.f32 %v491, %v491
    %v508 = vmul.f32 %v492, %v492
    %v509 = vmul.f32 %v493, %v493
    %v510 = vmul.f32 %v494, %v494
    %v511 = vmul.f32 %v495, %v495
    %v512 = vmul.f32 %v496, %v496
    %v513 = vmul.f32 %v497, %v497
    %v514 = vmul.f32 %v498, %v498
    %v515 = vmul.f32 %v499, %v499
    %v516 = vmul.f32 %v500, %v500
    %v517 = vmul.f32 %v501, %v501
    %v518 = vmul.f32 %v502, %v502
    %v519 = vmul.f32 %v503, %v503
    %v520 = vmul.f32 %v504, %v504
    %v521 = vadd.f32 %v408, %v505
    %v522 = vadd.f32 %v409, %v506
    %v523 = vadd.f32 %v410, %v507
    %v524 = vadd.f32 %v411, %v508
    %v525 = vadd.f32 %v412, %v509
    %v526 = vadd.f32 %v413, %v510
    %v527 = vadd.f32 %v414, %v511
    %v528 = vadd.f32 %v415, %v512
    %v529 = vadd.f32 %v416, %v513
    %v530 = vadd.f32 %v417, %v514
    %v531 = vadd.f32 %v418, %v515
    %v532 = vadd.f32 %v419, %v516
    %v533 = vadd.f32 %v420, %v517
    %v534 = vadd.f32 %v421, %v518
    %v535 = vadd.f32 %v422, %v519
    %v536 = vadd.f32 %v423, %v520
    %537 = vset.pattern.permute.xlu0 2
    %538 = vperm.xlu0 %537, %v36
    %v539 = vpop.permute.xlu0 %538
    %541 = vset.pattern.permute.xlu0 2
    %542 = vperm.xlu0 %541, %v37
    %v543 = vpop.permute.xlu0 %542
    %545 = vset.pattern.permute.xlu0 2
    %546 = vperm.xlu0 %545, %v38
    %v547 = vpop.permute.xlu0 %546
    %549 = vset.pattern.permute.xlu0 2
    %550 = vperm.xlu0 %549, %v39
    %v551 = vpop.permute.xlu0 %550
    %553 = vset.pattern.permute.xlu0 2
    %554 = vperm.xlu0 %553, %v40
    %v555 = vpop.permute.xlu0 %554
    %557 = vset.pattern.permute.xlu0 2
    %558 = vperm.xlu0 %557, %v41
    %v559 = vpop.permute.xlu0 %558
    %561 = vset.pattern.permute.xlu0 2
    %562 = vperm.xlu0 %561, %v42
    %v563 = vpop.permute.xlu0 %562
    %565 = vset.pattern.permute.xlu0 2
    %566 = vperm.xlu0 %565, %v43
    %v567 = vpop.permute.xlu0 %566
    %569 = vset.pattern.permute.xlu0 2
    %570 = vperm.xlu0 %569, %v44
    %v571 = vpop.permute.xlu0 %570
    %573 = vset.pattern.permute.xlu0 2
    %574 = vperm.xlu0 %573, %v45
    %v575 = vpop.permute.xlu0 %574
    %577 = vset.pattern.permute.xlu0 2
    %578 = vperm.xlu0 %577, %v46
    %v579 = vpop.permute.xlu0 %578
    %581 = vset.pattern.permute.xlu0 2
    %582 = vperm.xlu0 %581, %v47
    %v583 = vpop.permute.xlu0 %582
    %585 = vset.pattern.permute.xlu0 2
    %586 = vperm.xlu0 %585, %v48
    %v587 = vpop.permute.xlu0 %586
    %589 = vset.pattern.permute.xlu0 2
    %590 = vperm.xlu0 %589, %v49
    %v591 = vpop.permute.xlu0 %590
    %593 = vset.pattern.permute.xlu0 2
    %594 = vperm.xlu0 %593, %v50
    %v595 = vpop.permute.xlu0 %594
    %597 = vset.pattern.permute.xlu0 2
    %598 = vperm.xlu0 %597, %v51
    %v599 = vpop.permute.xlu0 %598
    %v601 = vperm.slane %v52, 2
    %v602 = vsub.f32 %v539, %v601
    %v603 = vsub.f32 %v543, %v601
    %v604 = vsub.f32 %v547, %v601
    %v605 = vsub.f32 %v551, %v601
    %v606 = vsub.f32 %v555, %v601
    %v607 = vsub.f32 %v559, %v601
    %v608 = vsub.f32 %v563, %v601
    %v609 = vsub.f32 %v567, %v601
    %v610 = vsub.f32 %v571, %v601
    %v611 = vsub.f32 %v575, %v601
    %v612 = vsub.f32 %v579, %v601
    %v613 = vsub.f32 %v583, %v601
    %v614 = vsub.f32 %v587, %v601
    %v615 = vsub.f32 %v591, %v601
    %v616 = vsub.f32 %v595, %v601
    %v617 = vsub.f32 %v599, %v601
    %v618 = vmul.f32 %v602, %v602
    %v619 = vmul.f32 %v603, %v603
    %v620 = vmul.f32 %v604, %v604
    %v621 = vmul.f32 %v605, %v605
    %v622 = vmul.f32 %v606, %v606
    %v623 = vmul.f32 %v607, %v607
    %v624 = vmul.f32 %v608, %v608
    %v625 = vmul.f32 %v609, %v609
    %v626 = vmul.f32 %v610, %v610
    %v627 = vmul.f32 %v611, %v611
    %v628 = vmul.f32 %v612, %v612
    %v629 = vmul.f32 %v613, %v613
    %v630 = vmul.f32 %v614, %v614
    %v631 = vmul.f32 %v615, %v615
    %v632 = vmul.f32 %v616, %v616
    %v633 = vmul.f32 %v617, %v617
    %v634 = vadd.f32 %v521, %v618
    %v635 = vadd.f32 %v522, %v619
    %v636 = vadd.f32 %v523, %v620
    %v637 = vadd.f32 %v524, %v621
    %v638 = vadd.f32 %v525, %v622
    %v639 = vadd.f32 %v526, %v623
    %v640 = vadd.f32 %v527, %v624
    %v641 = vadd.f32 %v528, %v625
    %v642 = vadd.f32 %v529, %v626
    %v643 = vadd.f32 %v530, %v627
    %v644 = vadd.f32 %v531, %v628
    %v645 = vadd.f32 %v532, %v629
    %v646 = vadd.f32 %v533, %v630
    %v647 = vadd.f32 %v534, %v631
    %v648 = vadd.f32 %v535, %v632
    %v649 = vadd.f32 %v536, %v633
    %v650 = vadd.f32 %v279, %v634
    %v651 = vadd.f32 %v280, %v635
    %v652 = vadd.f32 %v281, %v636
    %v653 = vadd.f32 %v282, %v637
    %v654 = vadd.f32 %v283, %v638
    %v655 = vadd.f32 %v284, %v639
    %v656 = vadd.f32 %v285, %v640
    %v657 = vadd.f32 %v286, %v641
    %v658 = vadd.f32 %v287, %v642
    %v659 = vadd.f32 %v288, %v643
    %v660 = vadd.f32 %v289, %v644
    %v661 = vadd.f32 %v290, %v645
    %v662 = vadd.f32 %v291, %v646
    %v663 = vadd.f32 %v292, %v647
    %v664 = vadd.f32 %v293, %v648
    %v665 = vadd.f32 %v294, %v649
    %v666 = vmul.f32 %v279, %v634
    %v667 = vmul.f32 %v280, %v635
    %v668 = vmul.f32 %v281, %v636
    %v669 = vmul.f32 %v282, %v637
    %v670 = vmul.f32 %v283, %v638
    %v671 = vmul.f32 %v284, %v639
    %v672 = vmul.f32 %v285, %v640
    %v673 = vmul.f32 %v286, %v641
    %v674 = vmul.f32 %v287, %v642
    %v675 = vmul.f32 %v288, %v643
    %v676 = vmul.f32 %v289, %v644
    %v677 = vmul.f32 %v290, %v645
    %v678 = vmul.f32 %v291, %v646
    %v679 = vmul.f32 %v292, %v647
    %v680 = vmul.f32 %v293, %v648
    %v681 = vmul.f32 %v294, %v649
    %v682 = vrsqrt.pop %v666
    %v683 = vmul.f32 %v682, %v666
    %v684 = vmul.f32 %v683, %v682
    %v685 = vmul.f32 0.5, %v684
    %v686 = vsub.f32 1.5, %v685
    %v687 = vmul.f32 %v682, %v686
    %v688 = vmul.f32 %v666, %v687
    %vm689 = vcmp.eq.f32.partialorder %v666, inf
    %v690 = vsel %vm689, %v666, %v688
    %vm691 = vcmp.eq.f32.partialorder %v666, 0.0
    %v692 = vand.u32 %v666, 2147483648
    %v693 = vsel %vm691, %v692, %v690
    %v694 = vrsqrt.pop %v667
    %v695 = vmul.f32 %v694, %v667
    %v696 = vmul.f32 %v695, %v694
    %v697 = vmul.f32 0.5, %v696
    %v698 = vsub.f32 1.5, %v697
    %v699 = vmul.f32 %v694, %v698
    %v700 = vmul.f32 %v667, %v699
    %vm701 = vcmp.eq.f32.partialorder %v667, inf
    %v702 = vsel %vm701, %v667, %v700
    %vm703 = vcmp.eq.f32.partialorder %v667, 0.0
    %v704 = vand.u32 %v667, 2147483648
    %v705 = vsel %vm703, %v704, %v702
    %v706 = vrsqrt.pop %v668
    %v707 = vmul.f32 %v706, %v668
    %v708 = vmul.f32 %v707, %v706
    %v709 = vmul.f32 0.5, %v708
    %v710 = vsub.f32 1.5, %v709
    %v711 = vmul.f32 %v706, %v710
    %v712 = vmul.f32 %v668, %v711
    %vm713 = vcmp.eq.f32.partialorder %v668, inf
    %v714 = vsel %vm713, %v668, %v712
    %vm715 = vcmp.eq.f32.partialorder %v668, 0.0
    %v716 = vand.u32 %v668, 2147483648
    %v717 = vsel %vm715, %v716, %v714
    %v718 = vrsqrt.pop %v669
    %v719 = vmul.f32 %v718, %v669
    %v720 = vmul.f32 %v719, %v718
    %v721 = vmul.f32 0.5, %v720
    %v722 = vsub.f32 1.5, %v721
    %v723 = vmul.f32 %v718, %v722
    %v724 = vmul.f32 %v669, %v723
    %vm725 = vcmp.eq.f32.partialorder %v669, inf
    %v726 = vsel %vm725, %v669, %v724
    %vm727 = vcmp.eq.f32.partialorder %v669, 0.0
    %v728 = vand.u32 %v669, 2147483648
    %v729 = vsel %vm727, %v728, %v726
    %v730 = vrsqrt.pop %v670
    %v731 = vmul.f32 %v730, %v670
    %v732 = vmul.f32 %v731, %v730
    %v733 = vmul.f32 0.5, %v732
    %v734 = vsub.f32 1.5, %v733
    %v735 = vmul.f32 %v730, %v734
    %v736 = vmul.f32 %v670, %v735
    %vm737 = vcmp.eq.f32.partialorder %v670, inf
    %v738 = vsel %vm737, %v670, %v736
    %vm739 = vcmp.eq.f32.partialorder %v670, 0.0
    %v740 = vand.u32 %v670, 2147483648
    %v741 = vsel %vm739, %v740, %v738
    %v742 = vrsqrt.pop %v671
    %v743 = vmul.f32 %v742, %v671
    %v744 = vmul.f32 %v743, %v742
    %v745 = vmul.f32 0.5, %v744
    %v746 = vsub.f32 1.5, %v745
    %v747 = vmul.f32 %v742, %v746
    %v748 = vmul.f32 %v671, %v747
    %vm749 = vcmp.eq.f32.partialorder %v671, inf
    %v750 = vsel %vm749, %v671, %v748
    %vm751 = vcmp.eq.f32.partialorder %v671, 0.0
    %v752 = vand.u32 %v671, 2147483648
    %v753 = vsel %vm751, %v752, %v750
    %v754 = vrsqrt.pop %v672
    %v755 = vmul.f32 %v754, %v672
    %v756 = vmul.f32 %v755, %v754
    %v757 = vmul.f32 0.5, %v756
    %v758 = vsub.f32 1.5, %v757
    %v759 = vmul.f32 %v754, %v758
    %v760 = vmul.f32 %v672, %v759
    %vm761 = vcmp.eq.f32.partialorder %v672, inf
    %v762 = vsel %vm761, %v672, %v760
    %vm763 = vcmp.eq.f32.partialorder %v672, 0.0
    %v764 = vand.u32 %v672, 2147483648
    %v765 = vsel %vm763, %v764, %v762
    %v766 = vrsqrt.pop %v673
    %v767 = vmul.f32 %v766, %v673
    %v768 = vmul.f32 %v767, %v766
    %v769 = vmul.f32 0.5, %v768
    %v770 = vsub.f32 1.5, %v769
    %v771 = vmul.f32 %v766, %v770
    %v772 = vmul.f32 %v673, %v771
    %vm773 = vcmp.eq.f32.partialorder %v673, inf
    %v774 = vsel %vm773, %v673, %v772
    %vm775 = vcmp.eq.f32.partialorder %v673, 0.0
    %v776 = vand.u32 %v673, 2147483648
    %v777 = vsel %vm775, %v776, %v774
    %v778 = vrsqrt.pop %v674
    %v779 = vmul.f32 %v778, %v674
    %v780 = vmul.f32 %v779, %v778
    %v781 = vmul.f32 0.5, %v780
    %v782 = vsub.f32 1.5, %v781
    %v783 = vmul.f32 %v778, %v782
    %v784 = vmul.f32 %v674, %v783
    %vm785 = vcmp.eq.f32.partialorder %v674, inf
    %v786 = vsel %vm785, %v674, %v784
    %vm787 = vcmp.eq.f32.partialorder %v674, 0.0
    %v788 = vand.u32 %v674, 2147483648
    %v789 = vsel %vm787, %v788, %v786
    %v790 = vrsqrt.pop %v675
    %v791 = vmul.f32 %v790, %v675
    %v792 = vmul.f32 %v791, %v790
    %v793 = vmul.f32 0.5, %v792
    %v794 = vsub.f32 1.5, %v793
    %v795 = vmul.f32 %v790, %v794
    %v796 = vmul.f32 %v675, %v795
    %vm797 = vcmp.eq.f32.partialorder %v675, inf
    %v798 = vsel %vm797, %v675, %v796
    %vm799 = vcmp.eq.f32.partialorder %v675, 0.0
    %v800 = vand.u32 %v675, 2147483648
    %v801 = vsel %vm799, %v800, %v798
    %v802 = vrsqrt.pop %v676
    %v803 = vmul.f32 %v802, %v676
    %v804 = vmul.f32 %v803, %v802
    %v805 = vmul.f32 0.5, %v804
    %v806 = vsub.f32 1.5, %v805
    %v807 = vmul.f32 %v802, %v806
    %v808 = vmul.f32 %v676, %v807
    %vm809 = vcmp.eq.f32.partialorder %v676, inf
    %v810 = vsel %vm809, %v676, %v808
    %vm811 = vcmp.eq.f32.partialorder %v676, 0.0
    %v812 = vand.u32 %v676, 2147483648
    %v813 = vsel %vm811, %v812, %v810
    %v814 = vrsqrt.pop %v677
    %v815 = vmul.f32 %v814, %v677
    %v816 = vmul.f32 %v815, %v814
    %v817 = vmul.f32 0.5, %v816
    %v818 = vsub.f32 1.5, %v817
    %v819 = vmul.f32 %v814, %v818
    %v820 = vmul.f32 %v677, %v819
    %vm821 = vcmp.eq.f32.partialorder %v677, inf
    %v822 = vsel %vm821, %v677, %v820
    %vm823 = vcmp.eq.f32.partialorder %v677, 0.0
    %v824 = vand.u32 %v677, 2147483648
    %v825 = vsel %vm823, %v824, %v822
    %v826 = vrsqrt.pop %v678
    %v827 = vmul.f32 %v826, %v678
    %v828 = vmul.f32 %v827, %v826
    %v829 = vmul.f32 0.5, %v828
    %v830 = vsub.f32 1.5, %v829
    %v831 = vmul.f32 %v826, %v830
    %v832 = vmul.f32 %v678, %v831
    %vm833 = vcmp.eq.f32.partialorder %v678, inf
    %v834 = vsel %vm833, %v678, %v832
    %vm835 = vcmp.eq.f32.partialorder %v678, 0.0
    %v836 = vand.u32 %v678, 2147483648
    %v837 = vsel %vm835, %v836, %v834
    %v838 = vrsqrt.pop %v679
    %v839 = vmul.f32 %v838, %v679
    %v840 = vmul.f32 %v839, %v838
    %v841 = vmul.f32 0.5, %v840
    %v842 = vsub.f32 1.5, %v841
    %v843 = vmul.f32 %v838, %v842
    %v844 = vmul.f32 %v679, %v843
    %vm845 = vcmp.eq.f32.partialorder %v679, inf
    %v846 = vsel %vm845, %v679, %v844
    %vm847 = vcmp.eq.f32.partialorder %v679, 0.0
    %v848 = vand.u32 %v679, 2147483648
    %v849 = vsel %vm847, %v848, %v846
    %v850 = vrsqrt.pop %v680
    %v851 = vmul.f32 %v850, %v680
    %v852 = vmul.f32 %v851, %v850
    %v853 = vmul.f32 0.5, %v852
    %v854 = vsub.f32 1.5, %v853
    %v855 = vmul.f32 %v850, %v854
    %v856 = vmul.f32 %v680, %v855
    %vm857 = vcmp.eq.f32.partialorder %v680, inf
    %v858 = vsel %vm857, %v680, %v856
    %vm859 = vcmp.eq.f32.partialorder %v680, 0.0
    %v860 = vand.u32 %v680, 2147483648
    %v861 = vsel %vm859, %v860, %v858
    %v862 = vrsqrt.pop %v681
    %v863 = vmul.f32 %v862, %v681
    %v864 = vmul.f32 %v863, %v862
    %v865 = vmul.f32 0.5, %v864
    %v866 = vsub.f32 1.5, %v865
    %v867 = vmul.f32 %v862, %v866
    %v868 = vmul.f32 %v681, %v867
    %vm869 = vcmp.eq.f32.partialorder %v681, inf
    %v870 = vsel %vm869, %v681, %v868
    %vm871 = vcmp.eq.f32.partialorder %v681, 0.0
    %v872 = vand.u32 %v681, 2147483648
    %v873 = vsel %vm871, %v872, %v870
    %v874 = vmul.f32 %v693, 2.0
    %v875 = vmul.f32 %v705, 2.0
    %v876 = vmul.f32 %v717, 2.0
    %v877 = vmul.f32 %v729, 2.0
    %v878 = vmul.f32 %v741, 2.0
    %v879 = vmul.f32 %v753, 2.0
    %v880 = vmul.f32 %v765, 2.0
    %v881 = vmul.f32 %v777, 2.0
    %v882 = vmul.f32 %v789, 2.0
    %v883 = vmul.f32 %v801, 2.0
    %v884 = vmul.f32 %v813, 2.0
    %v885 = vmul.f32 %v825, 2.0
    %v886 = vmul.f32 %v837, 2.0
    %v887 = vmul.f32 %v849, 2.0
    %v888 = vmul.f32 %v861, 2.0
    %v889 = vmul.f32 %v873, 2.0
    %v890 = vsub.f32 %v650, %v874
    %v891 = vsub.f32 %v651, %v875
    %v892 = vsub.f32 %v652, %v876
    %v893 = vsub.f32 %v653, %v877
    %v894 = vsub.f32 %v654, %v878
    %v895 = vsub.f32 %v655, %v879
    %v896 = vsub.f32 %v656, %v880
    %v897 = vsub.f32 %v657, %v881
    %v898 = vsub.f32 %v658, %v882
    %v899 = vsub.f32 %v659, %v883
    %v900 = vsub.f32 %v660, %v884
    %v901 = vsub.f32 %v661, %v885
    %v902 = vsub.f32 %v662, %v886
    %v903 = vsub.f32 %v663, %v887
    %v904 = vsub.f32 %v664, %v888
    %v905 = vsub.f32 %v665, %v889
    %v906 = vmul.f32 %v890, 100.0
    %v907 = vmul.f32 %v891, 100.0
    %v908 = vmul.f32 %v892, 100.0
    %v909 = vmul.f32 %v893, 100.0
    %v910 = vmul.f32 %v894, 100.0
    %v911 = vmul.f32 %v895, 100.0
    %v912 = vmul.f32 %v896, 100.0
    %v913 = vmul.f32 %v897, 100.0
    %v914 = vmul.f32 %v898, 100.0
    %v915 = vmul.f32 %v899, 100.0
    %v916 = vmul.f32 %v900, 100.0
    %v917 = vmul.f32 %v901, 100.0
    %v918 = vmul.f32 %v902, 100.0
    %v919 = vmul.f32 %v903, 100.0
    %v920 = vmul.f32 %v904, 100.0
    %v921 = vmul.f32 %v905, 100.0
    %v922 = vsub.f32 1.0, %v906
    %v923 = vsub.f32 1.0, %v907
    %v924 = vsub.f32 1.0, %v908
    %v925 = vsub.f32 1.0, %v909
    %v926 = vsub.f32 1.0, %v910
    %v927 = vsub.f32 1.0, %v911
    %v928 = vsub.f32 1.0, %v912
    %v929 = vsub.f32 1.0, %v913
    %v930 = vsub.f32 1.0, %v914
    %v931 = vsub.f32 1.0, %v915
    %v932 = vsub.f32 1.0, %v916
    %v933 = vsub.f32 1.0, %v917
    %v934 = vsub.f32 1.0, %v918
    %v935 = vsub.f32 1.0, %v919
    %v936 = vsub.f32 1.0, %v920
    %v937 = vsub.f32 1.0, %v921
    %v938 = vmax.f32 %v922, 0.0
    %v939 = vmax.f32 %v923, 0.0
    %v940 = vmax.f32 %v924, 0.0
    %v941 = vmax.f32 %v925, 0.0
    %v942 = vmax.f32 %v926, 0.0
    %v943 = vmax.f32 %v927, 0.0
    %v944 = vmax.f32 %v928, 0.0
    %v945 = vmax.f32 %v929, 0.0
    %v946 = vmax.f32 %v930, 0.0
    %v947 = vmax.f32 %v931, 0.0
    %v948 = vmax.f32 %v932, 0.0
    %v949 = vmax.f32 %v933, 0.0
    %v950 = vmax.f32 %v934, 0.0
    %v951 = vmax.f32 %v935, 0.0
    %v952 = vmax.f32 %v936, 0.0
    %v953 = vmax.f32 %v937, 0.0
    %v954 = vlaneseq
    %v955 = vshrl.u32 %v954, 7
    %v956 = vadd.s32 %v955, 8
    %v957 = vadd.s32 %v955, 16
    %v958 = vadd.s32 %v955, 24
    %v959 = vadd.s32 %v955, 32
    %v960 = vadd.s32 %v955, 40
    %v961 = vadd.s32 %v955, 48
    %v962 = vadd.s32 %v955, 56
    %v963 = vadd.s32 %v955, 64
    %v964 = vadd.s32 %v955, 72
    %v965 = vadd.s32 %v955, 80
    %v966 = vadd.s32 %v955, 88
    %v967 = vadd.s32 %v955, 96
    %v968 = vadd.s32 %v955, 104
    %v969 = vadd.s32 %v955, 112
    %v970 = vadd.s32 %v955, 120
    %v971 = vlaneseq
    %v972 = vand.u32 %v971, 127
    %vm973 = vcmp.lt.s32.totalorder %v955, 100
    %vm974 = vcmp.lt.s32.totalorder %v956, 100
    %vm975 = vcmp.lt.s32.totalorder %v957, 100
    %vm976 = vcmp.lt.s32.totalorder %v958, 100
    %vm977 = vcmp.lt.s32.totalorder %v959, 100
    %vm978 = vcmp.lt.s32.totalorder %v960, 100
    %vm979 = vcmp.lt.s32.totalorder %v961, 100
    %vm980 = vcmp.lt.s32.totalorder %v962, 100
    %vm981 = vcmp.lt.s32.totalorder %v963, 100
    %vm982 = vcmp.lt.s32.totalorder %v964, 100
    %vm983 = vcmp.lt.s32.totalorder %v965, 100
    %vm984 = vcmp.lt.s32.totalorder %v966, 100
    %vm985 = vcmp.lt.s32.totalorder %v967, 100
    %vm986 = vcmp.lt.s32.totalorder %v968, 100
    %vm987 = vcmp.lt.s32.totalorder %v969, 100
    %vm988 = vcmp.lt.s32.totalorder %v970, 100
    %vm989 = vcmp.lt.s32.totalorder %v972, 100
    %vm990 = vmand %vm973, %vm989
    %vm991 = vmand %vm974, %vm989
    %vm992 = vmand %vm975, %vm989
    %vm993 = vmand %vm976, %vm989
    %vm994 = vmand %vm977, %vm989
    %vm995 = vmand %vm978, %vm989
    %vm996 = vmand %vm979, %vm989
    %vm997 = vmand %vm980, %vm989
    %vm998 = vmand %vm981, %vm989
    %vm999 = vmand %vm982, %vm989
    %vm1000 = vmand %vm983, %vm989
    %vm1001 = vmand %vm984, %vm989
    %vm1002 = vmand %vm985, %vm989
    %vm1003 = vmand %vm986, %vm989
    %vm1004 = vmand %vm987, %vm989
    %vm1005 = vmand %vm988, %vm989
    %v1006 = vsel %vm990, %v938, 0.0
    %v1007 = vsel %vm991, %v939, 0.0
    %v1008 = vsel %vm992, %v940, 0.0
    %v1009 = vsel %vm993, %v941, 0.0
    %v1010 = vsel %vm994, %v942, 0.0
    %v1011 = vsel %vm995, %v943, 0.0
    %v1012 = vsel %vm996, %v944, 0.0
    %v1013 = vsel %vm997, %v945, 0.0
    %v1014 = vsel %vm998, %v946, 0.0
    %v1015 = vsel %vm999, %v947, 0.0
    %v1016 = vsel %vm1000, %v948, 0.0
    %v1017 = vsel %vm1001, %v949, 0.0
    %v1018 = vsel %vm1002, %v950, 0.0
    %v1019 = vsel %vm1003, %v951, 0.0
    %v1020 = vsel %vm1004, %v952, 0.0
    %v1021 = vsel %vm1005, %v953, 0.0
    %v1022 = vpack.c.bf16 %v1007, %v1006
    %v1023 = vpack.c.bf16 %v1009, %v1008
    %v1024 = vpack.c.bf16 %v1011, %v1010
    %v1025 = vpack.c.bf16 %v1013, %v1012
    %v1026 = vpack.c.bf16 %v1015, %v1014
    %v1027 = vpack.c.bf16 %v1017, %v1016
    %v1028 = vpack.c.bf16 %v1019, %v1018
    %v1029 = vpack.c.bf16 %v1021, %v1020
    %1030 = vmatpush.bf16.msra.mxu0 %v1029
    %1031 = vmatpush.bf16.msra.mxu0 %v1028
    %1032 = vmatpush.bf16.msra.mxu0 %v1027
    %1033 = vmatpush.bf16.msra.mxu0 %v1026
    %1034 = vmatpush.bf16.msra.mxu0 %v1025
    %1035 = vmatpush.bf16.msra.mxu0 %v1024
    %1036 = vmatpush.bf16.msra.mxu0 %v1023
    %1037 = vmatpush.bf16.msra.mxu0 %v1022
    %1038 = vmatmul.bf16.gmra.mxu0 1065369472
    %v1039 = vpop.f32.mrf.mxu0
    %v1040 = vadd.f32 0.0, %v1039
    %v1041 = vpop.f32.mrf.mxu0
    %1042 = vdwg.mxu0
    %v1043 = vpack.c.bf16 %v1040, %v1040
    %1044 = vmatpush.bf16.msra.mxu0 %v1029
    %1045 = vmatpush.bf16.msra.mxu0 %v1028
    %1046 = vmatpush.bf16.msra.mxu0 %v1027
    %1047 = vmatpush.bf16.msra.mxu0 %v1026
    %1048 = vmatpush.bf16.msra.mxu0 %v1025
    %1049 = vmatpush.bf16.msra.mxu0 %v1024
    %1050 = vmatpush.bf16.msra.mxu0 %v1023
    %1051 = vmatpush.bf16.msra.mxu0 %v1022
    %1052 = vmatmul.bf16.gmra.mxu0 %v1043
    %v1053 = vpop.f32.mrf.mxu0
    %v1054 = vadd.f32 0.0, %v1053
    %v1055 = vpop.f32.mrf.mxu0
    %1056 = vdwg.mxu0
    %v1057 = vmul.f32 %v1054, %v1054
    %1058 = vadd.xlane.f32.xlu0 %v1057
    %v1059 = vpop.xlane.xlu0 %1058
    %v1060 = vadd.f32 %v1059, 1e-12
    %v1061 = vrsqrt.pop %v1060
    %v1062 = vmul.f32 %v1061, %v1060
    %v1063 = vmul.f32 %v1062, %v1061
    %v1064 = vmul.f32 0.5, %v1063
    %v1065 = vsub.f32 1.5, %v1064
    %v1066 = vmul.f32 %v1061, %v1065
    %vm1067 = vweird.f32 %v1060
    %vm1068 = vweird.f32 %v1061
    %vm1069 = vmor %vm1067, %vm1068
    %v1070 = vsel %vm1069, %v1061, %v1066
    %v1071 = vmul.f32 %v1054, %v1070
    %v1072 = vpack.c.bf16 %v1071, %v1071
    %1073 = vmatpush.bf16.msra.mxu0 %v1029
    %1074 = vmatpush.bf16.msra.mxu0 %v1028
    %1075 = vmatpush.bf16.msra.mxu0 %v1027
    %1076 = vmatpush.bf16.msra.mxu0 %v1026
    %1077 = vmatpush.bf16.msra.mxu0 %v1025
    %1078 = vmatpush.bf16.msra.mxu0 %v1024
    %1079 = vmatpush.bf16.msra.mxu0 %v1023
    %1080 = vmatpush.bf16.msra.mxu0 %v1022
    %1081 = vmatmul.bf16.gmra.mxu0 %v1072
    %v1082 = vpop.f32.mrf.mxu0
    %v1083 = vadd.f32 0.0, %v1082
    %v1084 = vpop.f32.mrf.mxu0
    %1085 = vdwg.mxu0
    %v1086 = vpack.c.bf16 %v1083, %v1083
    %1087 = vmatpush.bf16.msra.mxu0 %v1029
    %1088 = vmatpush.bf16.msra.mxu0 %v1028
    %1089 = vmatpush.bf16.msra.mxu0 %v1027
    %1090 = vmatpush.bf16.msra.mxu0 %v1026
    %1091 = vmatpush.bf16.msra.mxu0 %v1025
    %1092 = vmatpush.bf16.msra.mxu0 %v1024
    %1093 = vmatpush.bf16.msra.mxu0 %v1023
    %1094 = vmatpush.bf16.msra.mxu0 %v1022
    %1095 = vmatmul.bf16.gmra.mxu0 %v1086
    %v1096 = vpop.f32.mrf.mxu0
    %v1097 = vadd.f32 0.0, %v1096
    %v1098 = vpop.f32.mrf.mxu0
    %1099 = vdwg.mxu0
    %v1100 = vmul.f32 %v1097, %v1097
    %1101 = vadd.xlane.f32.xlu0 %v1100
    %v1102 = vpop.xlane.xlu0 %1101
    %v1103 = vadd.f32 %v1102, 1e-12
    %v1104 = vrsqrt.pop %v1103
    %v1105 = vmul.f32 %v1104, %v1103
    %v1106 = vmul.f32 %v1105, %v1104
    %v1107 = vmul.f32 0.5, %v1106
    %v1108 = vsub.f32 1.5, %v1107
    %v1109 = vmul.f32 %v1104, %v1108
    %vm1110 = vweird.f32 %v1103
    %vm1111 = vweird.f32 %v1104
    %vm1112 = vmor %vm1110, %vm1111
    %v1113 = vsel %vm1112, %v1104, %v1109
    %v1114 = vmul.f32 %v1097, %v1113
    %v1115 = vpack.c.bf16 %v1114, %v1114
    %1116 = vmatpush.bf16.msra.mxu0 %v1029
    %1117 = vmatpush.bf16.msra.mxu0 %v1028
    %1118 = vmatpush.bf16.msra.mxu0 %v1027
    %1119 = vmatpush.bf16.msra.mxu0 %v1026
    %1120 = vmatpush.bf16.msra.mxu0 %v1025
    %1121 = vmatpush.bf16.msra.mxu0 %v1024
    %1122 = vmatpush.bf16.msra.mxu0 %v1023
    %1123 = vmatpush.bf16.msra.mxu0 %v1022
    %1124 = vmatmul.bf16.gmra.mxu0 %v1115
    %v1125 = vpop.f32.mrf.mxu0
    %v1126 = vadd.f32 0.0, %v1125
    %v1127 = vpop.f32.mrf.mxu0
    %1128 = vdwg.mxu0
    %v1129 = vpack.c.bf16 %v1126, %v1126
    %1130 = vmatpush.bf16.msra.mxu0 %v1029
    %1131 = vmatpush.bf16.msra.mxu0 %v1028
    %1132 = vmatpush.bf16.msra.mxu0 %v1027
    %1133 = vmatpush.bf16.msra.mxu0 %v1026
    %1134 = vmatpush.bf16.msra.mxu0 %v1025
    %1135 = vmatpush.bf16.msra.mxu0 %v1024
    %1136 = vmatpush.bf16.msra.mxu0 %v1023
    %1137 = vmatpush.bf16.msra.mxu0 %v1022
    %1138 = vmatmul.bf16.gmra.mxu0 %v1129
    %v1139 = vpop.f32.mrf.mxu0
    %v1140 = vadd.f32 0.0, %v1139
    %v1141 = vpop.f32.mrf.mxu0
    %1142 = vdwg.mxu0
    %v1143 = vmul.f32 %v1140, %v1140
    %1144 = vadd.xlane.f32.xlu0 %v1143
    %v1145 = vpop.xlane.xlu0 %1144
    %v1146 = vadd.f32 %v1145, 1e-12
    %v1147 = vrsqrt.pop %v1146
    %v1148 = vmul.f32 %v1147, %v1146
    %v1149 = vmul.f32 %v1148, %v1147
    %v1150 = vmul.f32 0.5, %v1149
    %v1151 = vsub.f32 1.5, %v1150
    %v1152 = vmul.f32 %v1147, %v1151
    %vm1153 = vweird.f32 %v1146
    %vm1154 = vweird.f32 %v1147
    %vm1155 = vmor %vm1153, %vm1154
    %v1156 = vsel %vm1155, %v1147, %v1152
    %v1157 = vmul.f32 %v1140, %v1156
    %v1158 = vpack.c.bf16 %v1157, %v1157
    %1159 = vmatpush.bf16.msra.mxu0 %v1029
    %1160 = vmatpush.bf16.msra.mxu0 %v1028
    %1161 = vmatpush.bf16.msra.mxu0 %v1027
    %1162 = vmatpush.bf16.msra.mxu0 %v1026
    %1163 = vmatpush.bf16.msra.mxu0 %v1025
    %1164 = vmatpush.bf16.msra.mxu0 %v1024
    %1165 = vmatpush.bf16.msra.mxu0 %v1023
    %1166 = vmatpush.bf16.msra.mxu0 %v1022
    %1167 = vmatmul.bf16.gmra.mxu0 %v1158
    %v1168 = vpop.f32.mrf.mxu0
    %v1169 = vadd.f32 0.0, %v1168
    %v1170 = vpop.f32.mrf.mxu0
    %1171 = vdwg.mxu0
    %v1172 = vpack.c.bf16 %v1169, %v1169
    %1173 = vmatpush.bf16.msra.mxu0 %v1029
    %1174 = vmatpush.bf16.msra.mxu0 %v1028
    %1175 = vmatpush.bf16.msra.mxu0 %v1027
    %1176 = vmatpush.bf16.msra.mxu0 %v1026
    %1177 = vmatpush.bf16.msra.mxu0 %v1025
    %1178 = vmatpush.bf16.msra.mxu0 %v1024
    %1179 = vmatpush.bf16.msra.mxu0 %v1023
    %1180 = vmatpush.bf16.msra.mxu0 %v1022
    %1181 = vmatmul.bf16.gmra.mxu0 %v1172
    %v1182 = vpop.f32.mrf.mxu0
    %v1183 = vadd.f32 0.0, %v1182
    %v1184 = vpop.f32.mrf.mxu0
    %1185 = vdwg.mxu0
    %v1186 = vmul.f32 %v1183, %v1183
    %1187 = vadd.xlane.f32.xlu0 %v1186
    %v1188 = vpop.xlane.xlu0 %1187
    %v1189 = vadd.f32 %v1188, 1e-12
    %v1190 = vrsqrt.pop %v1189
    %v1191 = vmul.f32 %v1190, %v1189
    %v1192 = vmul.f32 %v1191, %v1190
    %v1193 = vmul.f32 0.5, %v1192
    %v1194 = vsub.f32 1.5, %v1193
    %v1195 = vmul.f32 %v1190, %v1194
    %vm1196 = vweird.f32 %v1189
    %vm1197 = vweird.f32 %v1190
    %vm1198 = vmor %vm1196, %vm1197
    %v1199 = vsel %vm1198, %v1190, %v1195
    %v1200 = vmul.f32 %v1183, %v1199
    %v1201 = vpack.c.bf16 %v1200, %v1200
    %1202 = vmatpush.bf16.msra.mxu0 %v1029
    %1203 = vmatpush.bf16.msra.mxu0 %v1028
    %1204 = vmatpush.bf16.msra.mxu0 %v1027
    %1205 = vmatpush.bf16.msra.mxu0 %v1026
    %1206 = vmatpush.bf16.msra.mxu0 %v1025
    %1207 = vmatpush.bf16.msra.mxu0 %v1024
    %1208 = vmatpush.bf16.msra.mxu0 %v1023
    %1209 = vmatpush.bf16.msra.mxu0 %v1022
    %1210 = vmatmul.bf16.gmra.mxu0 %v1201
    %v1211 = vpop.f32.mrf.mxu0
    %v1212 = vadd.f32 0.0, %v1211
    %v1213 = vpop.f32.mrf.mxu0
    %1214 = vdwg.mxu0
    %v1215 = vpack.c.bf16 %v1212, %v1212
    %1216 = vmatpush.bf16.msra.mxu0 %v1029
    %1217 = vmatpush.bf16.msra.mxu0 %v1028
    %1218 = vmatpush.bf16.msra.mxu0 %v1027
    %1219 = vmatpush.bf16.msra.mxu0 %v1026
    %1220 = vmatpush.bf16.msra.mxu0 %v1025
    %1221 = vmatpush.bf16.msra.mxu0 %v1024
    %1222 = vmatpush.bf16.msra.mxu0 %v1023
    %1223 = vmatpush.bf16.msra.mxu0 %v1022
    %1224 = vmatmul.bf16.gmra.mxu0 %v1215
    %v1225 = vpop.f32.mrf.mxu0
    %v1226 = vadd.f32 0.0, %v1225
    %v1227 = vpop.f32.mrf.mxu0
    %1228 = vdwg.mxu0
    %v1229 = vmul.f32 %v1226, %v1226
    %1230 = vadd.xlane.f32.xlu0 %v1229
    %v1231 = vpop.xlane.xlu0 %1230
    %v1232 = vrsqrt.pop %v1231
    %v1233 = vmul.f32 %v1232, %v1231
    %v1234 = vmul.f32 %v1233, %v1232
    %v1235 = vmul.f32 0.5, %v1234
    %v1236 = vsub.f32 1.5, %v1235
    %v1237 = vmul.f32 %v1232, %v1236
    %v1238 = vmul.f32 %v1231, %v1237
    %vm1239 = vcmp.eq.f32.partialorder %v1231, inf
    %v1240 = vsel %vm1239, %v1231, %v1238
    %vm1241 = vcmp.eq.f32.partialorder %v1231, 0.0
    %v1242 = vand.u32 %v1231, 2147483648
    %v1243 = vsel %vm1241, %v1242, %v1240
    %v1244 = vadd.f32 %v1243, 1e-06
    %v1245 = vrcp.pop %v1244
    %v1246 = vmul.f32 %v1244, %v1245
    %v1247 = vsub.f32 1.0, %v1246
    %v1248 = vmul.f32 %v1245, %v1247
    %v1249 = vadd.f32 %v1245, %v1248
    %vm1250 = vweird.f32 %v1244
    %vm1251 = vweird.f32 %v1245
    %vm1252 = vmor %vm1250, %vm1251
    %v1253 = vsel %vm1252, %v1245, %v1249
    %v1254 = vand.u32 2147483647, %v1244
    %vm1255 = vcmp.eq.f32.partialorder %v1254, 8.507059e+37
    %v1256 = vand.u32 %v1244, 2147483648
    %v1257 = vor.u32 1.1754944e-38, %v1256
    %v1258 = vsel %vm1255, %v1257, %v1253
    %v1259 = vmul.f32 %v1226, %v1258
    %1260 = vst [vmem:[#allocation2] sm:$0x1] %v1259
    // Predicated region
    $region18: #{tpu_custom_call.1} parent=1 // pred_check
      _
    $region19: #{tpu_custom_call.1} parent=1 // pred_check_branch
      %1262 = sbr.rel (0) target = $region21
    $region20: #{tpu_custom_call.1} parent=1 // pred_region
      %1264 = vsyncadd [#allocation3], 0
      %s1266 = sshll.u32 [#allocation2], 4
      %s1267 = int_to_ptr.vmem [resolvable:$true] %s1266
      %s1268 = sshll.u32 %s4, 4
      %s1269 = int_to_ptr.hbm [resolvable:$true] %s1268
      %1271 = dma.vmem_to_hbm [thread:$0]  %s1267, 16, %s1269, [#allocation3]
    $region21: #{tpu_custom_call.1} parent=1 // pred_fallthru
      _
    // Predicated region
    $region22: #{tpu_custom_call.1} parent=1 // pred_check
      _
    $region23: #{tpu_custom_call.1} parent=1 // pred_check_branch
      %1273 = sbr.rel (0) target = $region25
    $region24: #{tpu_custom_call.1} parent=1 // pred_region
      %1275 = dma.done [#allocation3], 16
    $region25: #{tpu_custom_call.1} parent=1 // pred_fallthru
      _
    %1276 = vsyncpa [#allocation3], 1

</llo_original>
